<compile_context>
chip_gen: v6e
topology: v6e:2x2x1
jax: 0.10.0
libtpu: 0.0.40
codegen_flags: <defaults>
</compile_context>

<pallas_src>
import jax
import jax.numpy as jnp
from jax import lax
from jax.experimental import pallas as pl
from jax.experimental.pallas import tpu as pltpu

# FetchReachDense-v2: observation['observation'] is 10-dim, action is 4-dim.
OBS_DIM = 10
ACT_DIM = 4
IN_DIM = OBS_DIM + ACT_DIM          # 14
H1, H2, H3, OUT = 256, 128, 64, 1


def _round_up(x, m):
    return (x + m - 1) // m * m


def _critic_kernel(obs_ref, act_ref, w1_ref, b1_ref, w2_ref, b2_ref,
                   w3_ref, b3_ref, w4_ref, b4_ref, o_ref):
    bf16, f32 = jnp.bfloat16, jnp.float32

    # Fused concat: obs (tb,10) ++ act (tb,4) -> (tb,14), done in-register
    # (cheap lane shift + select), then ONE shallow-K MXU pass for layer 1.
    x = jnp.concatenate([obs_ref[...], act_ref[...]], axis=-1).astype(bf16)

    # Layer 1: (tb, 14) @ (14, 256) -> ReLU
    h = jnp.dot(x, w1_ref[...], preferred_element_type=f32)
    h = jnp.maximum(h + b1_ref[...], 0.0)

    # Layer 2: (tb, 256) @ (256, 128) -> ReLU
    h = jnp.dot(h.astype(bf16), w2_ref[...], preferred_element_type=f32)
    h = jnp.maximum(h + b2_ref[...], 0.0)

    # Layer 3: (tb, 128) @ (128, 64) -> ReLU
    h = jnp.dot(h.astype(bf16), w3_ref[...], preferred_element_type=f32)
    h = jnp.maximum(h + b3_ref[...], 0.0)

    # Layer 4, lane-dense: (1,64) @ (tb,64)^T -> (1, tb)  (A @ B^T, like q@k^T).
    q = lax.dot_general(w4_ref[...], h.astype(bf16),
                        dimension_numbers=(((1,), (1,)), ((), ())),
                        preferred_element_type=f32)
    o_ref[...] = (q + b4_ref[...]).astype(o_ref.dtype)


def _choose_tile_b(B):
    # Small batch: one full-batch step (block == full array, no 128-lane rule).
    if B <= 256:
        return max(8, _round_up(B, 8))
    # >= 2 steps so ("parallel",) shards across v7x's two TensorCores; cap at
    # 2048 rows/step (plenty to amortize the ~0.35us/step overhead).  Multiple
    # of 128 so the lane-dense (1, tile_b) output block is legal in a
    # multi-step grid.
    return min(2048, _round_up(-(-B // 2), 128))


def critic_forward(obs, act, kparams, *, tile_b=None):
    """Pallas Critic forward. obs: (B, OBS_DIM), act: (B, ACT_DIM) -> (B, 1) f32."""
    B = obs.shape[0]
    assert obs.shape == (B, OBS_DIM) and act.shape == (B, ACT_DIM), (obs.shape, act.shape)

    if tile_b is None:
        tile_b = _choose_tile_b(B)
    else:
        tile_b = max(8, _round_up(tile_b, 8))
        if _round_up(B, tile_b) > tile_b:       # multi-step grid -> 128-mult lane block
            tile_b = _round_up(tile_b, 128)

    B_pad = _round_up(B, tile_b)
    if B_pad != B:
        pad = B_pad - B
        obs = jnp.pad(obs, ((0, pad), (0, 0)))
        act = jnp.pad(act, ((0, pad), (0, 0)))

    w1, b1, w2, b2, w3, b3, w4r, b4 = kparams

    def resident(a):
        # Weight / bias block: whole (2-D) array, same block for every step.
        return pl.BlockSpec(a.shape, lambda i: (0, 0))

    grid = (B_pad // tile_b,)
    out = pl.pallas_call(
        _critic_kernel,
        out_shape=jax.ShapeDtypeStruct((1, B_pad), jnp.float32),
        grid_spec=pltpu.PrefetchScalarGridSpec(
            num_scalar_prefetch=0,
            grid=grid,
            in_specs=[
                pl.BlockSpec((tile_b, OBS_DIM), lambda i: (i, 0)),
                pl.BlockSpec((tile_b, ACT_DIM), lambda i: (i, 0)),
                resident(w1), resident(b1),
                resident(w2), resident(b2),
                resident(w3), resident(b3),
                resident(w4r), resident(b4),
            ],
            out_specs=pl.BlockSpec((1, tile_b), lambda i: (0, i)),
        ),
        compiler_params=pltpu.CompilerParams(
            dimension_semantics=("parallel",),
            vmem_limit_bytes=32 * 1024 * 1024),
    )(obs, act, w1, b1, w2, b2, w3, b3, w4r, b4)

    return out[0, :B].reshape(B, OUT)


def init_params(key):
    """Deterministic f32 init matching torch.nn.Linear default U(-1/sqrt(fan_in), +).
    Returns torch-style params: W as (in, out), b as (1, out)."""
    dims = [(IN_DIM, H1), (H1, H2), (H2, H3), (H3, OUT)]
    params = []
    for (fan_in, fan_out) in dims:
        key, kw, kb = jax.random.split(key, 3)
        bound = 1.0 / jnp.sqrt(float(fan_in))
        w = jax.random.uniform(kw, (fan_in, fan_out), jnp.float32, -bound, bound)
        b = jax.random.uniform(kb, (1, fan_out), jnp.float32, -bound, bound)
        params += [w, b]
    return tuple(params)


def prepare_params(params):
    """Convert f32 (in,out)/(1,out) params into the kernel layout:
    bf16 matmul weights, f32 biases, W4 flattened into a (1, 64) bf16 row."""
    w1, b1, w2, b2, w3, b3, w4, b4 = params
    bf16, f32 = jnp.bfloat16, jnp.float32
    return (
        w1.astype(bf16),                      # (14, 256)
        b1.astype(f32),                       # (1, 256)
        w2.astype(bf16), b2.astype(f32),      # (256, 128), (1, 128)
        w3.astype(bf16), b3.astype(f32),      # (128, 64),  (1, 64)
        w4.reshape(1, H3).astype(bf16),       # (1, 64) row for the A@B^T final layer
        b4.astype(f32),                       # (1, 1)
    )


def critic_ref_f32(obs, act, params):
    """Pure-f32 JAX reference of the PyTorch forward (torch semantics)."""
    w1, b1, w2, b2, w3, b3, w4, b4 = params
    x = jnp.concatenate([obs, act], axis=-1)
    x = jnp.maximum(x @ w1 + b1, 0.0)
    x = jnp.maximum(x @ w2 + b2, 0.0)
    x = jnp.maximum(x @ w3 + b3, 0.0)
    return x @ w4 + b4


def critic_ref_bf16(obs, act, kparams):
    """Reference mimicking the kernel's bf16-operand / f32-accumulate math."""
    w1, b1, w2, b2, w3, b3, w4r, b4 = kparams
    bf16, f32 = jnp.bfloat16, jnp.float32
    x = jnp.concatenate([obs, act], axis=-1).astype(bf16)
    h = jnp.maximum(jnp.dot(x, w1, preferred_element_type=f32) + b1, 0.0)
    h = jnp.maximum(jnp.dot(h.astype(bf16), w2, preferred_element_type=f32) + b2, 0.0)
    h = jnp.maximum(jnp.dot(h.astype(bf16), w3, preferred_element_type=f32) + b3, 0.0)
    q = lax.dot_general(w4r, h.astype(bf16),
                        dimension_numbers=(((1,), (1,)), ((), ())),
                        preferred_element_type=f32) + b4
    return q.reshape(-1, 1)


if __name__ == "__main__":
    key = jax.random.PRNGKey(0)
    kp, kdata = jax.random.split(key)

    params = init_params(kp)
    kparams = prepare_params(params)

    # B=8  : single-step grid, block == full array.
    # B=300: padded batch, 128-mult tile, 2-step grid (megacore / pipelined path).
    for B in (8, 300):
        kb = jax.random.fold_in(kdata, B)
        ko, ka = jax.random.split(kb)
        obs = jax.random.normal(ko, (B, OBS_DIM), jnp.float32)
        act = jax.random.normal(ka, (B, ACT_DIM), jnp.float32)

        q = jax.block_until_ready(critic_forward(obs, act, kparams))
        assert q.shape == (B, OUT), q.shape

        # Tight check against a reference using identical bf16 quantization.
        q_bf = critic_ref_bf16(obs, act, kparams)
        assert jnp.allclose(q, q_bf, atol=2e-3, rtol=2e-3), (B, q, q_bf)

        # Loose sanity check against the pure-f32 torch-semantics reference.
        q_f32 = critic_ref_f32(obs, act, params)
        assert jnp.allclose(q, q_f32, atol=1e-1, rtol=1e-1), (B, q, q_f32)

    print("KERNEL_OK")
</pallas_src>

<mosaic_0001>
module attributes {stable_mosaic.version = 11 : i64} {
  func.func @_critic_kernel(%arg0: i32, %arg1: memref<8x10xf32, #tpu.memory_space<vmem>>, %arg2: memref<8x4xf32, #tpu.memory_space<vmem>>, %arg3: memref<14x256xbf16, #tpu.memory_space<vmem>>, %arg4: memref<1x256xf32, #tpu.memory_space<vmem>>, %arg5: memref<256x128xbf16, #tpu.memory_space<vmem>>, %arg6: memref<1x128xf32, #tpu.memory_space<vmem>>, %arg7: memref<128x64xbf16, #tpu.memory_space<vmem>>, %arg8: memref<1x64xf32, #tpu.memory_space<vmem>>, %arg9: memref<1x64xbf16, #tpu.memory_space<vmem>>, %arg10: memref<1x1xf32, #tpu.memory_space<vmem>>, %arg11: memref<1x8xf32, #tpu.memory_space<vmem>>) attributes {dimension_semantics = [#tpu.dimension_semantics<parallel>], iteration_bounds = array<i64: 1>, scalar_prefetch = 0 : i64, scratch_operands = 0 : i64, tpu.core_type = #tpu.core_type<tc>, window_params = [{transform_indices = @transform_0, window_bounds = array<i64: 8, 10>}, {transform_indices = @transform_1, window_bounds = array<i64: 8, 4>}, {pipeline_mode = #tpu.pipeline_mode<synchronous>, transform_indices = @transform_2, window_bounds = array<i64: 14, 256>}, {pipeline_mode = #tpu.pipeline_mode<synchronous>, transform_indices = @transform_3, window_bounds = array<i64: 1, 256>}, {pipeline_mode = #tpu.pipeline_mode<synchronous>, transform_indices = @transform_4, window_bounds = array<i64: 256, 128>}, {pipeline_mode = #tpu.pipeline_mode<synchronous>, transform_indices = @transform_5, window_bounds = array<i64: 1, 128>}, {pipeline_mode = #tpu.pipeline_mode<synchronous>, transform_indices = @transform_6, window_bounds = array<i64: 128, 64>}, {pipeline_mode = #tpu.pipeline_mode<synchronous>, transform_indices = @transform_7, window_bounds = array<i64: 1, 64>}, {pipeline_mode = #tpu.pipeline_mode<synchronous>, transform_indices = @transform_8, window_bounds = array<i64: 1, 64>}, {pipeline_mode = #tpu.pipeline_mode<synchronous>, transform_indices = @transform_9, window_bounds = array<i64: 1, 1>}, {transform_indices = @transform_10, window_bounds = array<i64: 1, 8>}]} {
    %c0 = arith.constant 0 : index
    %c0_0 = arith.constant 0 : index
    %0 = vector.load %arg1[%c0, %c0_0] : memref<8x10xf32, #tpu.memory_space<vmem>>, vector<8x10xf32>
    %c0_1 = arith.constant 0 : index
    %c0_2 = arith.constant 0 : index
    %1 = vector.load %arg2[%c0_1, %c0_2] : memref<8x4xf32, #tpu.memory_space<vmem>>, vector<8x4xf32>
    %2 = tpu.concatenate %0, %1 in 1 : vector<8x10xf32>, vector<8x4xf32> -> vector<8x14xf32>
    %3 = arith.truncf %2 : vector<8x14xf32> to vector<8x14xbf16>
    %c0_3 = arith.constant 0 : index
    %c0_4 = arith.constant 0 : index
    %4 = vector.load %arg3[%c0_3, %c0_4] : memref<14x256xbf16, #tpu.memory_space<vmem>>, vector<14x256xbf16>
    %cst = arith.constant dense<0.000000e+00> : vector<8x256xf32>
    %5 = tpu.matmul %3, %4, %cst {dimension_numbers = #tpu.dot_dimension_numbers<[1], [0], [0], [1], [0, 0, 1, 1], [], []>} : vector<8x14xbf16>, vector<14x256xbf16>, vector<8x256xf32> -> vector<8x256xf32>
    %c0_5 = arith.constant 0 : index
    %c0_6 = arith.constant 0 : index
    %6 = vector.load %arg4[%c0_5, %c0_6] : memref<1x256xf32, #tpu.memory_space<vmem>>, vector<1x256xf32>
    %7 = vector.broadcast %6 : vector<1x256xf32> to vector<8x256xf32>
    %8 = arith.addf %5, %7 : vector<8x256xf32>
    %cst_7 = arith.constant 0.000000e+00 : f32
    %9 = vector.broadcast %cst_7 : f32 to vector<8x256xf32>
    %10 = arith.maximumf %8, %9 : vector<8x256xf32>
    %11 = arith.truncf %10 : vector<8x256xf32> to vector<8x256xbf16>
    %c0_8 = arith.constant 0 : index
    %c0_9 = arith.constant 0 : index
    %12 = vector.load %arg5[%c0_8, %c0_9] : memref<256x128xbf16, #tpu.memory_space<vmem>>, vector<256x128xbf16>
    %cst_10 = arith.constant dense<0.000000e+00> : vector<8x128xf32>
    %13 = tpu.matmul %11, %12, %cst_10 {dimension_numbers = #tpu.dot_dimension_numbers<[1], [0], [0], [1], [0, 0, 1, 1], [], []>} : vector<8x256xbf16>, vector<256x128xbf16>, vector<8x128xf32> -> vector<8x128xf32>
    %c0_11 = arith.constant 0 : index
    %c0_12 = arith.constant 0 : index
    %14 = vector.load %arg6[%c0_11, %c0_12] : memref<1x128xf32, #tpu.memory_space<vmem>>, vector<1x128xf32>
    %15 = vector.broadcast %14 : vector<1x128xf32> to vector<8x128xf32>
    %16 = arith.addf %13, %15 : vector<8x128xf32>
    %cst_13 = arith.constant 0.000000e+00 : f32
    %17 = vector.broadcast %cst_13 : f32 to vector<8x128xf32>
    %18 = arith.maximumf %16, %17 : vector<8x128xf32>
    %19 = arith.truncf %18 : vector<8x128xf32> to vector<8x128xbf16>
    %c0_14 = arith.constant 0 : index
    %c0_15 = arith.constant 0 : index
    %20 = vector.load %arg7[%c0_14, %c0_15] : memref<128x64xbf16, #tpu.memory_space<vmem>>, vector<128x64xbf16>
    %cst_16 = arith.constant dense<0.000000e+00> : vector<8x64xf32>
    %21 = tpu.matmul %19, %20, %cst_16 {dimension_numbers = #tpu.dot_dimension_numbers<[1], [0], [0], [1], [0, 0, 1, 1], [], []>} : vector<8x128xbf16>, vector<128x64xbf16>, vector<8x64xf32> -> vector<8x64xf32>
    %c0_17 = arith.constant 0 : index
    %c0_18 = arith.constant 0 : index
    %22 = vector.load %arg8[%c0_17, %c0_18] : memref<1x64xf32, #tpu.memory_space<vmem>>, vector<1x64xf32>
    %23 = vector.broadcast %22 : vector<1x64xf32> to vector<8x64xf32>
    %24 = arith.addf %21, %23 : vector<8x64xf32>
    %cst_19 = arith.constant 0.000000e+00 : f32
    %25 = vector.broadcast %cst_19 : f32 to vector<8x64xf32>
    %26 = arith.maximumf %24, %25 : vector<8x64xf32>
    %c0_20 = arith.constant 0 : index
    %c0_21 = arith.constant 0 : index
    %27 = vector.load %arg9[%c0_20, %c0_21] : memref<1x64xbf16, #tpu.memory_space<vmem>>, vector<1x64xbf16>
    %28 = arith.truncf %26 : vector<8x64xf32> to vector<8x64xbf16>
    %cst_22 = arith.constant dense<0.000000e+00> : vector<1x8xf32>
    %29 = tpu.matmul %27, %28, %cst_22 {dimension_numbers = #tpu.dot_dimension_numbers<[1], [1], [0], [0], [0, 0, 1, 0], [], []>} : vector<1x64xbf16>, vector<8x64xbf16>, vector<1x8xf32> -> vector<1x8xf32>
    %c0_23 = arith.constant 0 : index
    %c0_24 = arith.constant 0 : index
    %30 = vector.load %arg10[%c0_23, %c0_24] : memref<1x1xf32, #tpu.memory_space<vmem>>, vector<1x1xf32>
    %31 = vector.broadcast %30 : vector<1x1xf32> to vector<1x8xf32>
    %32 = arith.addf %29, %31 : vector<1x8xf32>
    %c0_25 = arith.constant 0 : index
    %c0_26 = arith.constant 0 : index
    %33 = vector.load %arg11[%c0_25, %c0_26] : memref<1x8xf32, #tpu.memory_space<vmem>>, vector<1x8xf32>
    tpu.vector_store %arg11[%c0_25, %c0_26], %32 {strides = array<i32>} : memref<1x8xf32, #tpu.memory_space<vmem>>, vector<1x8xf32>,
    return
  }
  func.func @transform_0(%arg0: i32) -> (i32, i32) {
    %c0_i32 = arith.constant 0 : i32
    %c0_i32_0 = arith.constant 0 : i32
    return %arg0, %c0_i32 : i32, i32
  }
  func.func @transform_1(%arg0: i32) -> (i32, i32) {
    %c0_i32 = arith.constant 0 : i32
    %c0_i32_0 = arith.constant 0 : i32
    return %arg0, %c0_i32 : i32, i32
  }
  func.func @transform_2(%arg0: i32) -> (i32, i32) {
    %c0_i32 = arith.constant 0 : i32
    %c0_i32_0 = arith.constant 0 : i32
    %c0_i32_1 = arith.constant 0 : i32
    return %c0_i32, %c0_i32_0 : i32, i32
  }
  func.func @transform_3(%arg0: i32) -> (i32, i32) {
    %c0_i32 = arith.constant 0 : i32
    %c0_i32_0 = arith.constant 0 : i32
    %c0_i32_1 = arith.constant 0 : i32
    return %c0_i32, %c0_i32_0 : i32, i32
  }
  func.func @transform_4(%arg0: i32) -> (i32, i32) {
    %c0_i32 = arith.constant 0 : i32
    %c0_i32_0 = arith.constant 0 : i32
    %c0_i32_1 = arith.constant 0 : i32
    return %c0_i32, %c0_i32_0 : i32, i32
  }
  func.func @transform_5(%arg0: i32) -> (i32, i32) {
    %c0_i32 = arith.constant 0 : i32
    %c0_i32_0 = arith.constant 0 : i32
    %c0_i32_1 = arith.constant 0 : i32
    return %c0_i32, %c0_i32_0 : i32, i32
  }
  func.func @transform_6(%arg0: i32) -> (i32, i32) {
    %c0_i32 = arith.constant 0 : i32
    %c0_i32_0 = arith.constant 0 : i32
    %c0_i32_1 = arith.constant 0 : i32
    return %c0_i32, %c0_i32_0 : i32, i32
  }
  func.func @transform_7(%arg0: i32) -> (i32, i32) {
    %c0_i32 = arith.constant 0 : i32
    %c0_i32_0 = arith.constant 0 : i32
    %c0_i32_1 = arith.constant 0 : i32
    return %c0_i32, %c0_i32_0 : i32, i32
  }
  func.func @transform_8(%arg0: i32) -> (i32, i32) {
    %c0_i32 = arith.constant 0 : i32
    %c0_i32_0 = arith.constant 0 : i32
    %c0_i32_1 = arith.constant 0 : i32
    return %c0_i32, %c0_i32_0 : i32, i32
  }
  func.func @transform_9(%arg0: i32) -> (i32, i32) {
    %c0_i32 = arith.constant 0 : i32
    %c0_i32_0 = arith.constant 0 : i32
    %c0_i32_1 = arith.constant 0 : i32
    return %c0_i32, %c0_i32_0 : i32, i32
  }
  func.func @transform_10(%arg0: i32) -> (i32, i32) {
    %c0_i32 = arith.constant 0 : i32
    %c0_i32_0 = arith.constant 0 : i32
    return %c0_i32, %arg0 : i32, i32
  }
}

</mosaic_0001>

<llo_original>
// kernel: tpu_custom_call.1
$region0: #{tpu_custom_call.1}
  #allocation0 [shape = 'u32[]', space=smem, size = 0x4, offset = 0x4, fixed_abs, tag = 'smem constant byte address 0x4 - core index']
  #allocation1 [shape = 'u32[144,128]{1,0:T(1,128)}', space=vmem, size = 0x12000, scoped, tag = 'internal scratch']
  #allocation2 [shape = 'f32[1,1]{1,0:T(1,128)S(1)}', space=vmem, size = 0x200, scoped, tag = 'scoped memory for tpu_custom_call.1']
  %s0 = inlined_call_operand.vmem [shape: f32[8,10], index: 0, kind: input, shape index: {}]
  %s1 = inlined_call_operand.vmem [shape: f32[8,4], index: 1, kind: input, shape index: {}]
  %s2 = inlined_call_operand.vmem [shape: bf16[14,256], index: 2, kind: input, shape index: {}]
  %s3 = inlined_call_operand.vmem [shape: f32[1,256], index: 3, kind: input, shape index: {}]
  %s4 = inlined_call_operand.hbm [shape: bf16[256,128], index: 4, kind: input, shape index: {}]
  %s5 = inlined_call_operand.vmem [shape: f32[1,128], index: 5, kind: input, shape index: {}]
  %s6 = inlined_call_operand.vmem [shape: bf16[128,64], index: 6, kind: input, shape index: {}]
  %s7 = inlined_call_operand.vmem [shape: f32[1,64], index: 7, kind: input, shape index: {}]
  %s8 = inlined_call_operand.vmem [shape: bf16[1,64], index: 8, kind: input, shape index: {}]
  %s9 = inlined_call_operand.<no memory space> [shape: f32[1,1], index: 9, kind: input, shape index: {}]
  %s10 = inlined_call_operand.hbm [shape: f32[1,8], index: 10, kind: output, shape index: {}]
  %s11 = sld [smem:[#allocation0]]
  $region54: #{tpu_custom_call.1} parent=0
    _
  %s13 = ssub.s32 1, %s11
  %s14 = scalar_select 0, %s13, %s11
  %v15 = vstv %s9
  %16 = vst [vmem:[#allocation2] sm:$0x1] %v15
  $region1: #{tpu_custom_call.1} parent=0
    #allocation3 [shape = 'u8[65536]{0}', space=vmem, size = 0x10000, scoped, tag = 'input window, operand 4, single buffered']
    #allocation4 [shape = 's32[1]{0}', space=sflag, size = 0x4, scoped, tag = 'scoped memory for tpu_custom_call.1']
    #allocation5 [shape = 's32[1]{0}', space=sflag, size = 0x4, scoped, tag = 'scoped memory for tpu_custom_call.1']
    #allocation6 [shape = 'u8[512]{0}', space=vmem, size = 0x400, scoped, tag = 'output window, operand 0, single buffered']
    %17 = vsyncpa [#allocation4], 0
    %18 = vsyncpa [#allocation5], 0
    // Predicated region
    $region2: #{tpu_custom_call.1} parent=1 // pred_check
      _
    $region3: #{tpu_custom_call.1} parent=1 // pred_check_branch
      %20 = sbr.rel (0) target = $region5
    $region4: #{tpu_custom_call.1} parent=1 // pred_region
      _
    $region5: #{tpu_custom_call.1} parent=1 // pred_fallthru
      _
    // Predicated region
    $region6: #{tpu_custom_call.1} parent=1 // pred_check
      _
    $region7: #{tpu_custom_call.1} parent=1 // pred_check_branch
      %22 = sbr.rel (0) target = $region9
    $region8: #{tpu_custom_call.1} parent=1 // pred_region
      _
    $region9: #{tpu_custom_call.1} parent=1 // pred_fallthru
      _
    // Predicated region
    $region10: #{tpu_custom_call.1} parent=1 // pred_check
      _
    $region11: #{tpu_custom_call.1} parent=1 // pred_check_branch
      %24 = sbr.rel (0) target = $region13
    $region12: #{tpu_custom_call.1} parent=1 // pred_region
      _
    $region13: #{tpu_custom_call.1} parent=1 // pred_fallthru
      _
    // Predicated region
    $region14: #{tpu_custom_call.1} parent=1 // pred_check
      _
    $region15: #{tpu_custom_call.1} parent=1 // pred_check_branch
      %26 = sbr.rel (0) target = $region17
    $region16: #{tpu_custom_call.1} parent=1 // pred_region
      _
    $region17: #{tpu_custom_call.1} parent=1 // pred_fallthru
      _
    // Predicated region
    $region18: #{tpu_custom_call.1} parent=1 // pred_check
      _
    $region19: #{tpu_custom_call.1} parent=1 // pred_check_branch
      %28 = sbr.rel (0) target = $region21
    $region20: #{tpu_custom_call.1} parent=1 // pred_region
      %s30 = ssub.s32 2048, 2048
      %31 = vsyncadd [#allocation4], %s30
      %s32 = sshll.u32 [#allocation3], 4
      %s33 = int_to_ptr.vmem [resolvable:$true] %s32
      %38 = dma.hbm_to_vmem [thread:$0]  %s4, 2048, %s33, [#allocation4], 64, 64, 4
    $region21: #{tpu_custom_call.1} parent=1 // pred_fallthru
      _
    // Predicated region
    $region22: #{tpu_custom_call.1} parent=1 // pred_check
      _
    $region23: #{tpu_custom_call.1} parent=1 // pred_check_branch
      %40 = sbr.rel (0) target = $region25
    $region24: #{tpu_custom_call.1} parent=1 // pred_region
      _
    $region25: #{tpu_custom_call.1} parent=1 // pred_fallthru
      _
    // Predicated region
    $region26: #{tpu_custom_call.1} parent=1 // pred_check
      _
    $region27: #{tpu_custom_call.1} parent=1 // pred_check_branch
      %42 = sbr.rel (0) target = $region29
    $region28: #{tpu_custom_call.1} parent=1 // pred_region
      _
    $region29: #{tpu_custom_call.1} parent=1 // pred_fallthru
      _
    // Predicated region
    $region30: #{tpu_custom_call.1} parent=1 // pred_check
      _
    $region31: #{tpu_custom_call.1} parent=1 // pred_check_branch
      %44 = sbr.rel (0) target = $region33
    $region32: #{tpu_custom_call.1} parent=1 // pred_region
      _
    $region33: #{tpu_custom_call.1} parent=1 // pred_fallthru
      _
    // Predicated region
    $region34: #{tpu_custom_call.1} parent=1 // pred_check
      _
    $region35: #{tpu_custom_call.1} parent=1 // pred_check_branch
      %46 = sbr.rel (0) target = $region37
    $region36: #{tpu_custom_call.1} parent=1 // pred_region
      _
    $region37: #{tpu_custom_call.1} parent=1 // pred_fallthru
      _
    // Predicated region
    $region38: #{tpu_custom_call.1} parent=1 // pred_check
      _
    $region39: #{tpu_custom_call.1} parent=1 // pred_check_branch
      %48 = sbr.rel (0) target = $region41
    $region40: #{tpu_custom_call.1} parent=1 // pred_region
      _
    $region41: #{tpu_custom_call.1} parent=1 // pred_fallthru
      _
    // Predicated region
    $region42: #{tpu_custom_call.1} parent=1 // pred_check
      _
    $region43: #{tpu_custom_call.1} parent=1 // pred_check_branch
      %50 = sbr.rel (0) target = $region45
    $region44: #{tpu_custom_call.1} parent=1 // pred_region
      %51 = dma.done [#allocation4], 2048
    $region45: #{tpu_custom_call.1} parent=1 // pred_fallthru
      _
    %v53 = vld [vmem:[%s0] sm:$0xff]
    %v54 = vld [vmem:[%s1] sm:$0xff]
    %56 = vrot.lane.b32.xlu0 %v54, 10
    %v57 = vpop.permute.xlu0 %56
    %vm59 = vcmask 80896
    %v60 = vsel %vm59, %v53, %v57
    %v61 = vpack.c.bf16 %v60, %v60
    %v62 = vld [vmem:[%s2] sm:$0xff]
    %v63 = vld [vmem:[%s2 + $0x8] sm:$0x77]
    %v64 = vld [vmem:[%s3] sm:$0x3]
    %v66 = vlaneseq
    %v67 = vshrl.u32 %v66, 7
    %v68 = vsub.s32 0, %v67
    %v69 = vrot.slane %v64, %v68
    %v70 = vlaneseq
    %v71 = vshrl.u32 %v70, 7
    %v72 = vsub.s32 1, %v71
    %v73 = vrot.slane %v64, %v72
    %v78 = vunpack.c.l.b16 %v62
    %v79 = vunpack.c.h.b16 %v62
    %v80 = vunpack.c.l.b16 %v63
    %v81 = vunpack.c.h.b16 %v63
    %v82 = vpack.c.b16 %v80, %v78
    %v83 = vpack.c.b16 %v81, %v79
    %vm84 = vcmask 113664
    %v86 = vsel %vm84, %v61, 0
    %vm88 = vcmask 1046528
    %v90 = vsel %vm88, %v82, 0
    %v93 = vsel %vm88, %v83, 0
    %95 = vmatprep.subr.bf16.mxu0 0
    %96 = vmatpush1.bf16.msra.mxu0 0
    %97 = vmatprep.subr.bf16.mxu0 0
    %98 = vmatpush1.bf16.msra.mxu0 0
    %99 = vmatprep.subr.bf16.mxu0 0
    %100 = vmatpush1.bf16.msra.mxu0 0
    %101 = vmatprep.subr.bf16.mxu0 0
    %102 = vmatpush1.bf16.msra.mxu0 0
    %103 = vmatprep.subr.bf16.mxu0 0
    %104 = vmatpush1.bf16.msra.mxu0 0
    %105 = vmatprep.subr.bf16.mxu0 0
    %106 = vmatpush1.bf16.msra.mxu0 0
    %107 = vmatprep.subr.bf16.mxu0 0
    %108 = vmatpush1.bf16.msra.mxu0 0
    %109 = vmatprep.subr.bf16.mxu0 %v93
    %110 = vmatpush1.bf16.msra.mxu0 %v90
    %111 = vmatprep.subr.bf16.mxu0 0
    %112 = vmatpush2.bf16.msra.mxu0 0
    %113 = vmatprep.subr.bf16.mxu0 0
    %114 = vmatpush2.bf16.msra.mxu0 0
    %115 = vmatprep.subr.bf16.mxu0 0
    %116 = vmatpush2.bf16.msra.mxu0 0
    %117 = vmatprep.subr.bf16.mxu0 0
    %118 = vmatpush2.bf16.msra.mxu0 0
    %119 = vmatprep.subr.bf16.mxu0 0
    %120 = vmatpush2.bf16.msra.mxu0 0
    %121 = vmatprep.subr.bf16.mxu0 0
    %122 = vmatpush2.bf16.msra.mxu0 0
    %123 = vmatprep.subr.bf16.mxu0 0
    %124 = vmatpush2.bf16.msra.mxu0 0
    %125 = vmatprep.subr.bf16.mxu0 0
    %126 = vmatpush2.bf16.msra.mxu0 0
    %127 = vmatprep.mubr.bf16.mxu0 0
    %128 = vmatmul.mubr.bf16.gmra.mxu0 %v86
    %v129 = vpop.f32.mrf.mxu0
    %v130 = vadd.f32 %v69, %v129
    %v131 = vpop.f32.mrf.mxu0
    %v132 = vadd.f32 %v73, %v131
    %v133 = vpop.f32.mrf.mxu0
    %v134 = vpop.f32.mrf.mxu0
    %135 = vdwg.mxu0
    %v136 = vmax.f32 %v130, 0.0
    %v137 = vmax.f32 %v132, 0.0
    %v138 = vpack.c.bf16 %v136, %v136
    %v139 = vpack.c.bf16 %v137, %v137
    %v140 = vld [vmem:[#allocation3] sm:$0xf]
    %v141 = vld [vmem:[#allocation3 + $0x4] sm:$0xf]
    %v142 = vld [vmem:[#allocation3 + $0x8] sm:$0xf]
    %v143 = vld [vmem:[#allocation3 + $0xc] sm:$0xf]
    %v144 = vld [vmem:[#allocation3 + $0x10] sm:$0xf]
    %v145 = vld [vmem:[#allocation3 + $0x14] sm:$0xf]
    %v146 = vld [vmem:[#allocation3 + $0x18] sm:$0xf]
    %v147 = vld [vmem:[#allocation3 + $0x1c] sm:$0xf]
    %v148 = vld [vmem:[#allocation3 + $0x20] sm:$0xf]
    %v149 = vld [vmem:[#allocation3 + $0x24] sm:$0xf]
    %v150 = vld [vmem:[#allocation3 + $0x28] sm:$0xf]
    %v151 = vld [vmem:[#allocation3 + $0x2c] sm:$0xf]
    %v152 = vld [vmem:[#allocation3 + $0x30] sm:$0xf]
    %v153 = vld [vmem:[#allocation3 + $0x34] sm:$0xf]
    %v154 = vld [vmem:[#allocation3 + $0x38] sm:$0xf]
    %v155 = vld [vmem:[#allocation3 + $0x3c] sm:$0xf]
    %v156 = vld [vmem:[#allocation3 + $0x40] sm:$0xf]
    %v157 = vld [vmem:[#allocation3 + $0x44] sm:$0xf]
    %v158 = vld [vmem:[#allocation3 + $0x48] sm:$0xf]
    %v159 = vld [vmem:[#allocation3 + $0x4c] sm:$0xf]
    %v160 = vld [vmem:[#allocation3 + $0x50] sm:$0xf]
    %v161 = vld [vmem:[#allocation3 + $0x54] sm:$0xf]
    %v162 = vld [vmem:[#allocation3 + $0x58] sm:$0xf]
    %v163 = vld [vmem:[#allocation3 + $0x5c] sm:$0xf]
    %v164 = vld [vmem:[#allocation3 + $0x60] sm:$0xf]
    %v165 = vld [vmem:[#allocation3 + $0x64] sm:$0xf]
    %v166 = vld [vmem:[#allocation3 + $0x68] sm:$0xf]
    %v167 = vld [vmem:[#allocation3 + $0x6c] sm:$0xf]
    %v168 = vld [vmem:[#allocation3 + $0x70] sm:$0xf]
    %v169 = vld [vmem:[#allocation3 + $0x74] sm:$0xf]
    %v170 = vld [vmem:[#allocation3 + $0x78] sm:$0xf]
    %v171 = vld [vmem:[#allocation3 + $0x7c] sm:$0xf]
    %v172 = vld [vmem:[%s5] sm:$0x1]
    %v174 = vlaneseq
    %v175 = vshrl.u32 %v174, 7
    %v176 = vsub.s32 0, %v175
    %v177 = vrot.slane %v172, %v176
    %v211 = vunpack.c.l.b16 %v140
    %v212 = vunpack.c.l.b16 %v141
    %v213 = vunpack.c.l.b16 %v142
    %v214 = vunpack.c.l.b16 %v143
    %v215 = vunpack.c.l.b16 %v144
    %v216 = vunpack.c.l.b16 %v145
    %v217 = vunpack.c.l.b16 %v146
    %v218 = vunpack.c.l.b16 %v147
    %v219 = vunpack.c.l.b16 %v148
    %v220 = vunpack.c.l.b16 %v149
    %v221 = vunpack.c.l.b16 %v150
    %v222 = vunpack.c.l.b16 %v151
    %v223 = vunpack.c.l.b16 %v152
    %v224 = vunpack.c.l.b16 %v153
    %v225 = vunpack.c.l.b16 %v154
    %v226 = vunpack.c.l.b16 %v155
    %v227 = vunpack.c.l.b16 %v156
    %v228 = vunpack.c.l.b16 %v157
    %v229 = vunpack.c.l.b16 %v158
    %v230 = vunpack.c.l.b16 %v159
    %v231 = vunpack.c.l.b16 %v160
    %v232 = vunpack.c.l.b16 %v161
    %v233 = vunpack.c.l.b16 %v162
    %v234 = vunpack.c.l.b16 %v163
    %v235 = vunpack.c.l.b16 %v164
    %v236 = vunpack.c.l.b16 %v165
    %v237 = vunpack.c.l.b16 %v166
    %v238 = vunpack.c.l.b16 %v167
    %v239 = vunpack.c.l.b16 %v168
    %v240 = vunpack.c.l.b16 %v169
    %v241 = vunpack.c.l.b16 %v170
    %v242 = vunpack.c.l.b16 %v171
    %v243 = vpack.c.b16 %v212, %v211
    %v244 = vpack.c.b16 %v214, %v213
    %v245 = vpack.c.b16 %v216, %v215
    %v246 = vpack.c.b16 %v218, %v217
    %v247 = vpack.c.b16 %v220, %v219
    %v248 = vpack.c.b16 %v222, %v221
    %v249 = vpack.c.b16 %v224, %v223
    %v250 = vpack.c.b16 %v226, %v225
    %v251 = vpack.c.b16 %v228, %v227
    %v252 = vpack.c.b16 %v230, %v229
    %v253 = vpack.c.b16 %v232, %v231
    %v254 = vpack.c.b16 %v234, %v233
    %v255 = vpack.c.b16 %v236, %v235
    %v256 = vpack.c.b16 %v238, %v237
    %v257 = vpack.c.b16 %v240, %v239
    %v258 = vpack.c.b16 %v242, %v241
    %275 = vmatprep.subr.bf16.mxu0 0
    %276 = vmatpush1.bf16.msra.mxu0 %v250
    %277 = vmatprep.subr.bf16.mxu0 0
    %278 = vmatpush1.bf16.msra.mxu0 %v249
    %279 = vmatprep.subr.bf16.mxu0 0
    %280 = vmatpush1.bf16.msra.mxu0 %v248
    %281 = vmatprep.subr.bf16.mxu0 0
    %282 = vmatpush1.bf16.msra.mxu0 %v247
    %283 = vmatprep.subr.bf16.mxu0 0
    %284 = vmatpush1.bf16.msra.mxu0 %v246
    %285 = vmatprep.subr.bf16.mxu0 0
    %286 = vmatpush1.bf16.msra.mxu0 %v245
    %287 = vmatprep.subr.bf16.mxu0 0
    %288 = vmatpush1.bf16.msra.mxu0 %v244
    %289 = vmatprep.subr.bf16.mxu0 0
    %290 = vmatpush1.bf16.msra.mxu0 %v243
    %291 = vmatprep.subr.bf16.mxu0 0
    %292 = vmatpush2.bf16.msra.mxu0 %v258
    %293 = vmatprep.subr.bf16.mxu0 0
    %294 = vmatpush2.bf16.msra.mxu0 %v257
    %295 = vmatprep.subr.bf16.mxu0 0
    %296 = vmatpush2.bf16.msra.mxu0 %v256
    %297 = vmatprep.subr.bf16.mxu0 0
    %298 = vmatpush2.bf16.msra.mxu0 %v255
    %299 = vmatprep.subr.bf16.mxu0 0
    %300 = vmatpush2.bf16.msra.mxu0 %v254
    %301 = vmatprep.subr.bf16.mxu0 0
    %302 = vmatpush2.bf16.msra.mxu0 %v253
    %303 = vmatprep.subr.bf16.mxu0 0
    %304 = vmatpush2.bf16.msra.mxu0 %v252
    %305 = vmatprep.subr.bf16.mxu0 0
    %306 = vmatpush2.bf16.msra.mxu0 %v251
    %307 = vmatprep.mubr.bf16.mxu0 %v139
    %308 = vmatmul.mubr.bf16.gmra.mxu0 %v138
    %v309 = vpop.f32.mrf.mxu0
    %v310 = vadd.f32 %v177, %v309
    %v311 = vpop.f32.mrf.mxu0
    %v312 = vpop.f32.mrf.mxu0
    %v313 = vpop.f32.mrf.mxu0
    %314 = vdwg.mxu0
    %v315 = vmax.f32 %v310, 0.0
    %v316 = vpack.c.bf16 %v315, %v315
    %v317 = vld [vmem:[%s6] sm:$0xf]
    %v318 = vld [vmem:[%s6 + $0x4] sm:$0xf]
    %v319 = vld [vmem:[%s6 + $0x8] sm:$0xf]
    %v320 = vld [vmem:[%s6 + $0xc] sm:$0xf]
    %v321 = vld [vmem:[%s6 + $0x10] sm:$0xf]
    %v322 = vld [vmem:[%s6 + $0x14] sm:$0xf]
    %v323 = vld [vmem:[%s6 + $0x18] sm:$0xf]
    %v324 = vld [vmem:[%s6 + $0x1c] sm:$0xf]
    %v325 = vld [vmem:[%s6 + $0x20] sm:$0xf]
    %v326 = vld [vmem:[%s6 + $0x24] sm:$0xf]
    %v327 = vld [vmem:[%s6 + $0x28] sm:$0xf]
    %v328 = vld [vmem:[%s6 + $0x2c] sm:$0xf]
    %v329 = vld [vmem:[%s6 + $0x30] sm:$0xf]
    %v330 = vld [vmem:[%s6 + $0x34] sm:$0xf]
    %v331 = vld [vmem:[%s6 + $0x38] sm:$0xf]
    %v332 = vld [vmem:[%s6 + $0x3c] sm:$0xf]
    %v333 = vld [vmem:[%s7] sm:$0x1]
    %v335 = vlaneseq
    %v336 = vshrl.u32 %v335, 7
    %v337 = vsub.s32 0, %v336
    %v338 = vrot.slane %v333, %v337
    %v356 = vunpack.c.l.b16 %v317
    %v357 = vunpack.c.l.b16 %v318
    %v358 = vunpack.c.l.b16 %v319
    %v359 = vunpack.c.l.b16 %v320
    %v360 = vunpack.c.l.b16 %v321
    %v361 = vunpack.c.l.b16 %v322
    %v362 = vunpack.c.l.b16 %v323
    %v363 = vunpack.c.l.b16 %v324
    %v364 = vunpack.c.l.b16 %v325
    %v365 = vunpack.c.l.b16 %v326
    %v366 = vunpack.c.l.b16 %v327
    %v367 = vunpack.c.l.b16 %v328
    %v368 = vunpack.c.l.b16 %v329
    %v369 = vunpack.c.l.b16 %v330
    %v370 = vunpack.c.l.b16 %v331
    %v371 = vunpack.c.l.b16 %v332
    %v372 = vpack.c.b16 %v357, %v356
    %v373 = vpack.c.b16 %v359, %v358
    %v374 = vpack.c.b16 %v361, %v360
    %v375 = vpack.c.b16 %v363, %v362
    %v376 = vpack.c.b16 %v365, %v364
    %v377 = vpack.c.b16 %v367, %v366
    %v378 = vpack.c.b16 %v369, %v368
    %v379 = vpack.c.b16 %v371, %v370
    %388 = vmatprep.subr.bf16.mxu0 0
    %389 = vmatpush1.bf16.msra.mxu0 %v379
    %390 = vmatprep.subr.bf16.mxu0 0
    %391 = vmatpush1.bf16.msra.mxu0 %v378
    %392 = vmatprep.subr.bf16.mxu0 0
    %393 = vmatpush1.bf16.msra.mxu0 %v377
    %394 = vmatprep.subr.bf16.mxu0 0
    %395 = vmatpush1.bf16.msra.mxu0 %v376
    %396 = vmatprep.subr.bf16.mxu0 0
    %397 = vmatpush1.bf16.msra.mxu0 %v375
    %398 = vmatprep.subr.bf16.mxu0 0
    %399 = vmatpush1.bf16.msra.mxu0 %v374
    %400 = vmatprep.subr.bf16.mxu0 0
    %401 = vmatpush1.bf16.msra.mxu0 %v373
    %402 = vmatprep.subr.bf16.mxu0 0
    %403 = vmatpush1.bf16.msra.mxu0 %v372
    %404 = vmatprep.subr.bf16.mxu0 0
    %405 = vmatpush2.bf16.msra.mxu0 0
    %406 = vmatprep.subr.bf16.mxu0 0
    %407 = vmatpush2.bf16.msra.mxu0 0
    %408 = vmatprep.subr.bf16.mxu0 0
    %409 = vmatpush2.bf16.msra.mxu0 0
    %410 = vmatprep.subr.bf16.mxu0 0
    %411 = vmatpush2.bf16.msra.mxu0 0
    %412 = vmatprep.subr.bf16.mxu0 0
    %413 = vmatpush2.bf16.msra.mxu0 0
    %414 = vmatprep.subr.bf16.mxu0 0
    %415 = vmatpush2.bf16.msra.mxu0 0
    %416 = vmatprep.subr.bf16.mxu0 0
    %417 = vmatpush2.bf16.msra.mxu0 0
    %418 = vmatprep.subr.bf16.mxu0 0
    %419 = vmatpush2.bf16.msra.mxu0 0
    %420 = vmatprep.mubr.bf16.mxu0 0
    %421 = vmatmul.mubr.bf16.gmra.mxu0 %v316
    %v422 = vpop.f32.mrf.mxu0
    %v423 = vadd.f32 %v338, %v422
    %v424 = vpop.f32.mrf.mxu0
    %v425 = vpop.f32.mrf.mxu0
    %v426 = vpop.f32.mrf.mxu0
    %427 = vdwg.mxu0
    %v428 = vmax.f32 %v423, 0.0
    %v429 = vld [vmem:[%s8] sm:$0x1]
    %v430 = vpack.c.bf16 %v428, %v428
    %v431 = vld [vmem:[#allocation2] sm:$0x1]
    %433 = vset.pattern.permute.xlu0 0
    %434 = vperm.xlu0 %433, %v431
    %v435 = vpop.permute.xlu0 %434
    %v437 = vlaneseq
    %v438 = vshrl.u32 %v437, 7
    %v439 = vsub.s32 0, %v438
    %v440 = vrot.slane %v435, %v439
    %vm441 = vcmask 523264
    %v443 = vsel %vm441, %v429, 0
    %v446 = vsel %vm441, %v430, 0
    %448 = vmatprep.subr.bf16.mxu0 0
    %449 = vmatpush1.bf16.xpose.msra.mxu0 0
    %450 = vmatprep.subr.bf16.mxu0 0
    %451 = vmatpush1.bf16.xpose.msra.mxu0 0
    %452 = vmatprep.subr.bf16.mxu0 0
    %453 = vmatpush1.bf16.xpose.msra.mxu0 0
    %454 = vmatprep.subr.bf16.mxu0 0
    %455 = vmatpush1.bf16.xpose.msra.mxu0 0
    %456 = vmatprep.subr.bf16.mxu0 0
    %457 = vmatpush1.bf16.xpose.msra.mxu0 0
    %458 = vmatprep.subr.bf16.mxu0 0
    %459 = vmatpush1.bf16.xpose.msra.mxu0 0
    %460 = vmatprep.subr.bf16.mxu0 0
    %461 = vmatpush1.bf16.xpose.msra.mxu0 0
    %462 = vmatprep.subr.bf16.mxu0 0
    %463 = vmatpush1.bf16.xpose.msra.mxu0 %v446
    %464 = vmatprep.subr.bf16.mxu0 0
    %465 = vmatpush2.bf16.xpose.msra.mxu0 0
    %466 = vmatprep.subr.bf16.mxu0 0
    %467 = vmatpush2.bf16.xpose.msra.mxu0 0
    %468 = vmatprep.subr.bf16.mxu0 0
    %469 = vmatpush2.bf16.xpose.msra.mxu0 0
    %470 = vmatprep.subr.bf16.mxu0 0
    %471 = vmatpush2.bf16.xpose.msra.mxu0 0
    %472 = vmatprep.subr.bf16.mxu0 0
    %473 = vmatpush2.bf16.xpose.msra.mxu0 0
    %474 = vmatprep.subr.bf16.mxu0 0
    %475 = vmatpush2.bf16.xpose.msra.mxu0 0
    %476 = vmatprep.subr.bf16.mxu0 0
    %477 = vmatpush2.bf16.xpose.msra.mxu0 0
    %478 = vmatprep.subr.bf16.mxu0 0
    %479 = vmatpush2.bf16.xpose.msra.mxu0 0
    %480 = vmatprep.mubr.bf16.mxu0 0
    %481 = vmatmul.mubr.bf16.gmra.mxu0 %v443
    %v482 = vpop.f32.mrf.mxu0
    %v483 = vadd.f32 %v440, %v482
    %v484 = vpop.f32.mrf.mxu0
    %v485 = vpop.f32.mrf.mxu0
    %v486 = vpop.f32.mrf.mxu0
    %487 = vdwg.mxu0
    %vm488 = vcmask 57344
    %489 = vst.msk [vmem:[#allocation6] sm:$0x1] %vm488, %v483
    // Predicated region
    $region46: #{tpu_custom_call.1} parent=1 // pred_check
      _
    $region47: #{tpu_custom_call.1} parent=1 // pred_check_branch
      %491 = sbr.rel (0) target = $region49
    $region48: #{tpu_custom_call.1} parent=1 // pred_region
      %s493 = ssub.s32 16, 16
      %494 = vsyncadd [#allocation5], %s493
      %s496 = sshll.u32 [#allocation6], 4
      %s497 = int_to_ptr.vmem [resolvable:$true] %s496
      %499 = dma.vmem_to_hbm [thread:$0]  %s497, 16, %s10, [#allocation5]
    $region49: #{tpu_custom_call.1} parent=1 // pred_fallthru
      _
    // Predicated region
    $region50: #{tpu_custom_call.1} parent=1 // pred_check
      _
    $region51: #{tpu_custom_call.1} parent=1 // pred_check_branch
      %501 = sbr.rel (0) target = $region53
    $region52: #{tpu_custom_call.1} parent=1 // pred_region
      %502 = dma.done [#allocation5], 16
    $region53: #{tpu_custom_call.1} parent=1 // pred_fallthru
      _
    %503 = vsyncpa [#allocation4], 1
    %504 = vsyncpa [#allocation5], 1

</llo_original>
